<compile_context>
chip_gen: v7x
topology: tpu7x:2x2x1
jax: 0.10.0
libtpu: 0.0.40
codegen_flags: <defaults>
</compile_context>

<pallas_src>
import functools
import math

import jax
import jax.numpy as jnp
from jax.experimental import pallas as pl
from jax.experimental.pallas import tpu as pltpu

H1 = 120       # hidden1 width (PyTorch spec)
H1_PAD = 128   # padded to one full lane width
H2 = 32        # hidden2 width


def _round_up(x, m):
    return ((x + m - 1) // m) * m


def _discriminator_kernel(x_ref, w1_ref, w2_ref, w3_ref, b1_ref, b2_ref, b3_ref,
                          o_ref, *, compute_dtype):
    # x_ref:  (TB, n_states) f32      (cast to bf16 in-kernel; no wrapper pass)
    # w1_ref: (n_states, 128) bf16    cols 120..128 zero
    # w2_ref: (128, 32) bf16          rows 120..128 zero
    # w3_ref: (32, n_skills) bf16
    # b*_ref: (1, H) f32
    # o_ref:  (TB, n_skills) f32
    x = x_ref[...].astype(compute_dtype)

    h1 = jnp.dot(x, w1_ref[...], preferred_element_type=jnp.float32) + b1_ref[...]
    h1 = jnp.maximum(h1, 0.0).astype(compute_dtype)                 # (TB, 128)

    h2 = jnp.dot(h1, w2_ref[...], preferred_element_type=jnp.float32) + b2_ref[...]
    h2 = jnp.maximum(h2, 0.0).astype(compute_dtype)                 # (TB, 32)

    logits = jnp.dot(h2, w3_ref[...], preferred_element_type=jnp.float32) + b3_ref[...]
    o_ref[...] = logits.astype(o_ref.dtype)                         # (TB, n_skills)


def discriminator_forward(states, params, *, block_b=8192, compute_dtype=jnp.bfloat16):
    """states: (B, n_states) float32; params: dict from init_discriminator_params."""
    B, n_states = states.shape
    n_skills = int(params["n_skills"])

    # compute-dtype, padded weight tensors (bf16 for the MXU); biases stay f32
    w1 = params["w1_pad"].astype(compute_dtype)    # (n_states, 128)
    w2 = params["w2_pad"].astype(compute_dtype)    # (128, 32)
    w3 = params["w3"].astype(compute_dtype)        # (32, n_skills)
    b1 = params["b1_pad"].reshape(1, H1_PAD)       # (1, 128) f32
    b2 = params["b2"].reshape(1, H2)               # (1, 32)  f32
    b3 = params["b3"].reshape(1, n_skills)         # (1, n_skills) f32

    # Batch tile: big enough to amortize per-step overhead, but keep >= 2 grid
    # steps when B is modest so the parallel axis can use both v7x TensorCores.
    TB = max(8, min(block_b, _round_up(pl.cdiv(B, 2), 8)))
    grid = (pl.cdiv(B, TB),)   # ragged last tile is masked by Pallas; no padding

    flops = 2 * B * (n_states * H1_PAD + H1_PAD * H2 + H2 * n_skills)
    bytes_accessed = (
        B * n_states * 4                                    # x (f32, cast in-kernel)
        + (w1.size + w2.size + w3.size) * 2                 # weights (bf16)
        + (b1.size + b2.size + b3.size) * 4                 # biases (f32)
        + B * n_skills * 4                                  # output (f32, unpadded)
    )

    out = pl.pallas_call(
        functools.partial(_discriminator_kernel, compute_dtype=compute_dtype),
        out_shape=jax.ShapeDtypeStruct((B, n_skills), jnp.float32),
        grid=grid,
        in_specs=[
            pl.BlockSpec((TB, n_states), lambda i: (i, 0)),        # x: tiled over batch
            pl.BlockSpec((n_states, H1_PAD), lambda i: (0, 0)),    # w1: resident
            pl.BlockSpec((H1_PAD, H2), lambda i: (0, 0)),          # w2: resident
            pl.BlockSpec((H2, n_skills), lambda i: (0, 0)),        # w3: resident
            pl.BlockSpec((1, H1_PAD), lambda i: (0, 0)),           # b1
            pl.BlockSpec((1, H2), lambda i: (0, 0)),               # b2
            pl.BlockSpec((1, n_skills), lambda i: (0, 0)),         # b3
        ],
        out_specs=pl.BlockSpec((TB, n_skills), lambda i: (i, 0)),  # full last dim
        compiler_params=pltpu.CompilerParams(
            dimension_semantics=("parallel",),                     # megacore on v7x
            vmem_limit_bytes=48 * 1024 * 1024),                    # headroom, < v7x 64 MiB
        cost_estimate=pl.CostEstimate(
            flops=flops, transcendentals=0, bytes_accessed=bytes_accessed),
    )(states, w1, w2, w3, b1, b2, b3)

    return out   # already exactly (B, n_skills) — no post-kernel slice


def init_discriminator_params(key, n_states, n_skills):
    """Matches the PyTorch module's init_weight():
       hidden1/hidden2: kaiming_normal_ (fan_in, gain=sqrt(2)), zero bias
       q:               xavier_uniform_, zero bias
       Weights are stored transposed to (in, out) for x @ W; padded copies for
       the kernel carry zero rows/cols, which is numerically inert."""
    k1, k2, k3 = jax.random.split(key, 3)

    def he_normal(k, fan_in, fan_out):
        std = math.sqrt(2.0) / math.sqrt(fan_in)
        return std * jax.random.normal(k, (fan_in, fan_out), dtype=jnp.float32)

    def xavier_uniform(k, fan_in, fan_out):
        bound = math.sqrt(6.0 / (fan_in + fan_out))
        return jax.random.uniform(k, (fan_in, fan_out), dtype=jnp.float32,
                                  minval=-bound, maxval=bound)

    w1 = he_normal(k1, n_states, H1)            # (n_states, 120)
    w2 = he_normal(k2, H1, H2)                  # (120, 32)
    w3 = xavier_uniform(k3, H2, n_skills)       # (32, n_skills)
    b1 = jnp.zeros((H1,), jnp.float32)
    b2 = jnp.zeros((H2,), jnp.float32)
    b3 = jnp.zeros((n_skills,), jnp.float32)

    w1_pad = jnp.pad(w1, ((0, 0), (0, H1_PAD - H1)))   # (n_states, 128)
    w2_pad = jnp.pad(w2, ((0, H1_PAD - H1), (0, 0)))   # (128, 32)
    b1_pad = jnp.pad(b1, (0, H1_PAD - H1))             # (128,)

    return {
        "n_skills": n_skills,
        # unpadded (in, out) weights for the pure-JAX reference
        "w1": w1, "b1": b1, "w2": w2, "b2": b2, "w3": w3, "b3": b3,
        # padded tensors consumed by the Pallas kernel
        "w1_pad": w1_pad, "w2_pad": w2_pad, "b1_pad": b1_pad,
    }


def _reference_forward(states, params):
    h1 = jnp.maximum(states @ params["w1"] + params["b1"], 0.0)
    h2 = jnp.maximum(h1 @ params["w2"] + params["b2"], 0.0)
    return h2 @ params["w3"] + params["b3"]


if __name__ == "__main__":
    key = jax.random.PRNGKey(0)
    k_param, k_x = jax.random.split(key)

    batch, n_states, n_skills = 8, 16, 8
    params = init_discriminator_params(k_param, n_states, n_skills)
    states = jax.random.normal(k_x, (batch, n_states), dtype=jnp.float32)

    logits = discriminator_forward(states, params)
    jax.block_until_ready(logits)

    ref = _reference_forward(states, params)
    assert logits.shape == (batch, n_skills)
    # bf16 matmul inputs with f32 accumulation -> small relative error vs f32 ref
    assert jnp.allclose(logits, ref, atol=5e-2, rtol=5e-2), (
        float(jnp.max(jnp.abs(logits - ref))))

    print("KERNEL_OK")
</pallas_src>

<mosaic_0001>
module attributes {stable_mosaic.version = 11 : i64} {
  func.func @_discriminator_kernel(%arg0: i32, %arg1: memref<8x16xf32, #tpu.memory_space<vmem>>, %arg2: memref<16x128xbf16, #tpu.memory_space<vmem>>, %arg3: memref<128x32xbf16, #tpu.memory_space<vmem>>, %arg4: memref<32x8xbf16, #tpu.memory_space<vmem>>, %arg5: memref<1x128xf32, #tpu.memory_space<vmem>>, %arg6: memref<1x32xf32, #tpu.memory_space<vmem>>, %arg7: memref<1x8xf32, #tpu.memory_space<vmem>>, %arg8: memref<8x8xf32, #tpu.memory_space<vmem>>) attributes {dimension_semantics = [#tpu.dimension_semantics<parallel>], iteration_bounds = array<i64: 1>, scalar_prefetch = 0 : i64, scratch_operands = 0 : i64, tpu.core_type = #tpu.core_type<tc>, window_params = [{transform_indices = @transform_0, window_bounds = array<i64: 8, 16>}, {pipeline_mode = #tpu.pipeline_mode<synchronous>, transform_indices = @transform_1, window_bounds = array<i64: 16, 128>}, {pipeline_mode = #tpu.pipeline_mode<synchronous>, transform_indices = @transform_2, window_bounds = array<i64: 128, 32>}, {pipeline_mode = #tpu.pipeline_mode<synchronous>, transform_indices = @transform_3, window_bounds = array<i64: 32, 8>}, {pipeline_mode = #tpu.pipeline_mode<synchronous>, transform_indices = @transform_4, window_bounds = array<i64: 1, 128>}, {pipeline_mode = #tpu.pipeline_mode<synchronous>, transform_indices = @transform_5, window_bounds = array<i64: 1, 32>}, {pipeline_mode = #tpu.pipeline_mode<synchronous>, transform_indices = @transform_6, window_bounds = array<i64: 1, 8>}, {transform_indices = @transform_7, window_bounds = array<i64: 8, 8>}]} {
    %c0 = arith.constant 0 : index
    %c0_0 = arith.constant 0 : index
    %0 = vector.load %arg1[%c0, %c0_0] : memref<8x16xf32, #tpu.memory_space<vmem>>, vector<8x16xf32>
    %1 = arith.truncf %0 : vector<8x16xf32> to vector<8x16xbf16>
    %c0_1 = arith.constant 0 : index
    %c0_2 = arith.constant 0 : index
    %2 = vector.load %arg2[%c0_1, %c0_2] : memref<16x128xbf16, #tpu.memory_space<vmem>>, vector<16x128xbf16>
    %cst = arith.constant dense<0.000000e+00> : vector<8x128xf32>
    %3 = tpu.matmul %1, %2, %cst {dimension_numbers = #tpu.dot_dimension_numbers<[1], [0], [0], [1], [0, 0, 1, 1], [], []>} : vector<8x16xbf16>, vector<16x128xbf16>, vector<8x128xf32> -> vector<8x128xf32>
    %c0_3 = arith.constant 0 : index
    %c0_4 = arith.constant 0 : index
    %4 = vector.load %arg5[%c0_3, %c0_4] : memref<1x128xf32, #tpu.memory_space<vmem>>, vector<1x128xf32>
    %5 = vector.broadcast %4 : vector<1x128xf32> to vector<8x128xf32>
    %6 = arith.addf %3, %5 : vector<8x128xf32>
    %cst_5 = arith.constant 0.000000e+00 : f32
    %7 = vector.broadcast %cst_5 : f32 to vector<8x128xf32>
    %8 = arith.maximumf %6, %7 : vector<8x128xf32>
    %9 = arith.truncf %8 : vector<8x128xf32> to vector<8x128xbf16>
    %c0_6 = arith.constant 0 : index
    %c0_7 = arith.constant 0 : index
    %10 = vector.load %arg3[%c0_6, %c0_7] : memref<128x32xbf16, #tpu.memory_space<vmem>>, vector<128x32xbf16>
    %cst_8 = arith.constant dense<0.000000e+00> : vector<8x32xf32>
    %11 = tpu.matmul %9, %10, %cst_8 {dimension_numbers = #tpu.dot_dimension_numbers<[1], [0], [0], [1], [0, 0, 1, 1], [], []>} : vector<8x128xbf16>, vector<128x32xbf16>, vector<8x32xf32> -> vector<8x32xf32>
    %c0_9 = arith.constant 0 : index
    %c0_10 = arith.constant 0 : index
    %12 = vector.load %arg6[%c0_9, %c0_10] : memref<1x32xf32, #tpu.memory_space<vmem>>, vector<1x32xf32>
    %13 = vector.broadcast %12 : vector<1x32xf32> to vector<8x32xf32>
    %14 = arith.addf %11, %13 : vector<8x32xf32>
    %cst_11 = arith.constant 0.000000e+00 : f32
    %15 = vector.broadcast %cst_11 : f32 to vector<8x32xf32>
    %16 = arith.maximumf %14, %15 : vector<8x32xf32>
    %17 = arith.truncf %16 : vector<8x32xf32> to vector<8x32xbf16>
    %c0_12 = arith.constant 0 : index
    %c0_13 = arith.constant 0 : index
    %18 = vector.load %arg4[%c0_12, %c0_13] : memref<32x8xbf16, #tpu.memory_space<vmem>>, vector<32x8xbf16>
    %cst_14 = arith.constant dense<0.000000e+00> : vector<8x8xf32>
    %19 = tpu.matmul %17, %18, %cst_14 {dimension_numbers = #tpu.dot_dimension_numbers<[1], [0], [0], [1], [0, 0, 1, 1], [], []>} : vector<8x32xbf16>, vector<32x8xbf16>, vector<8x8xf32> -> vector<8x8xf32>
    %c0_15 = arith.constant 0 : index
    %c0_16 = arith.constant 0 : index
    %20 = vector.load %arg7[%c0_15, %c0_16] : memref<1x8xf32, #tpu.memory_space<vmem>>, vector<1x8xf32>
    %21 = vector.broadcast %20 : vector<1x8xf32> to vector<8x8xf32>
    %22 = arith.addf %19, %21 : vector<8x8xf32>
    %c0_17 = arith.constant 0 : index
    %c0_18 = arith.constant 0 : index
    %23 = vector.load %arg8[%c0_17, %c0_18] : memref<8x8xf32, #tpu.memory_space<vmem>>, vector<8x8xf32>
    tpu.vector_store %arg8[%c0_17, %c0_18], %22 {strides = array<i32>} : memref<8x8xf32, #tpu.memory_space<vmem>>, vector<8x8xf32>,
    return
  }
  func.func @transform_0(%arg0: i32) -> (i32, i32) {
    %c0_i32 = arith.constant 0 : i32
    %c0_i32_0 = arith.constant 0 : i32
    return %arg0, %c0_i32 : i32, i32
  }
  func.func @transform_1(%arg0: i32) -> (i32, i32) {
    %c0_i32 = arith.constant 0 : i32
    %c0_i32_0 = arith.constant 0 : i32
    %c0_i32_1 = arith.constant 0 : i32
    return %c0_i32, %c0_i32_0 : i32, i32
  }
  func.func @transform_2(%arg0: i32) -> (i32, i32) {
    %c0_i32 = arith.constant 0 : i32
    %c0_i32_0 = arith.constant 0 : i32
    %c0_i32_1 = arith.constant 0 : i32
    return %c0_i32, %c0_i32_0 : i32, i32
  }
  func.func @transform_3(%arg0: i32) -> (i32, i32) {
    %c0_i32 = arith.constant 0 : i32
    %c0_i32_0 = arith.constant 0 : i32
    %c0_i32_1 = arith.constant 0 : i32
    return %c0_i32, %c0_i32_0 : i32, i32
  }
  func.func @transform_4(%arg0: i32) -> (i32, i32) {
    %c0_i32 = arith.constant 0 : i32
    %c0_i32_0 = arith.constant 0 : i32
    %c0_i32_1 = arith.constant 0 : i32
    return %c0_i32, %c0_i32_0 : i32, i32
  }
  func.func @transform_5(%arg0: i32) -> (i32, i32) {
    %c0_i32 = arith.constant 0 : i32
    %c0_i32_0 = arith.constant 0 : i32
    %c0_i32_1 = arith.constant 0 : i32
    return %c0_i32, %c0_i32_0 : i32, i32
  }
  func.func @transform_6(%arg0: i32) -> (i32, i32) {
    %c0_i32 = arith.constant 0 : i32
    %c0_i32_0 = arith.constant 0 : i32
    %c0_i32_1 = arith.constant 0 : i32
    return %c0_i32, %c0_i32_0 : i32, i32
  }
  func.func @transform_7(%arg0: i32) -> (i32, i32) {
    %c0_i32 = arith.constant 0 : i32
    %c0_i32_0 = arith.constant 0 : i32
    return %arg0, %c0_i32 : i32, i32
  }
}

</mosaic_0001>

<llo_original>
// kernel: tpu_custom_call.1
$region0: #{tpu_custom_call.1}
  #allocation0 [shape = 'u32[]', space=smem, size = 0x4, offset = 0x4, fixed_abs, tag = 'smem constant byte address 0x4 - core index']
  #allocation1 [shape = 'u32[144,128]{1,0:T(1,128)}', space=vmem, size = 0x12000, scoped, tag = 'internal scratch']
  %s0 = inlined_call_operand.vmem [shape: f32[8,16], index: 0, kind: input, shape index: {}]
  %s1 = inlined_call_operand.vmem [shape: bf16[16,128], index: 1, kind: input, shape index: {}]
  %s2 = inlined_call_operand.vmem [shape: bf16[128,32], index: 2, kind: input, shape index: {}]
  %s3 = inlined_call_operand.vmem [shape: bf16[32,8], index: 3, kind: input, shape index: {}]
  %s4 = inlined_call_operand.vmem [shape: f32[1,128], index: 4, kind: input, shape index: {}]
  %s5 = inlined_call_operand.vmem [shape: f32[1,32], index: 5, kind: input, shape index: {}]
  %s6 = inlined_call_operand.vmem [shape: f32[1,8], index: 6, kind: input, shape index: {}]
  %s7 = inlined_call_operand.hbm [shape: f32[8,8], index: 7, kind: output, shape index: {}]
  %s8 = sld [smem:[#allocation0]]
  $region38: #{tpu_custom_call.1} parent=0
    _
  %s10 = ssub.s32 1, %s8
  %s11 = scalar_select 0, %s10, %s8
  $region1: #{tpu_custom_call.1} parent=0
    #allocation2 [shape = 'u8[4096]{0}', space=vmem, size = 0x1000, scoped, tag = 'output window, operand 0, single buffered']
    #allocation3 [shape = 's32[1]{0}', space=sflag, size = 0x4, scoped, tag = 'scoped memory for tpu_custom_call.1']
    %12 = vsyncpa [#allocation3], 0
    // Predicated region
    $region2: #{tpu_custom_call.1} parent=1 // pred_check
      _
    $region3: #{tpu_custom_call.1} parent=1 // pred_check_branch
      %14 = sbr.rel (0) target = $region5
    $region4: #{tpu_custom_call.1} parent=1 // pred_region
      _
    $region5: #{tpu_custom_call.1} parent=1 // pred_fallthru
      _
    // Predicated region
    $region6: #{tpu_custom_call.1} parent=1 // pred_check
      _
    $region7: #{tpu_custom_call.1} parent=1 // pred_check_branch
      %16 = sbr.rel (0) target = $region9
    $region8: #{tpu_custom_call.1} parent=1 // pred_region
      _
    $region9: #{tpu_custom_call.1} parent=1 // pred_fallthru
      _
    // Predicated region
    $region10: #{tpu_custom_call.1} parent=1 // pred_check
      _
    $region11: #{tpu_custom_call.1} parent=1 // pred_check_branch
      %18 = sbr.rel (0) target = $region13
    $region12: #{tpu_custom_call.1} parent=1 // pred_region
      _
    $region13: #{tpu_custom_call.1} parent=1 // pred_fallthru
      _
    // Predicated region
    $region14: #{tpu_custom_call.1} parent=1 // pred_check
      _
    $region15: #{tpu_custom_call.1} parent=1 // pred_check_branch
      %20 = sbr.rel (0) target = $region17
    $region16: #{tpu_custom_call.1} parent=1 // pred_region
      _
    $region17: #{tpu_custom_call.1} parent=1 // pred_fallthru
      _
    // Predicated region
    $region18: #{tpu_custom_call.1} parent=1 // pred_check
      _
    $region19: #{tpu_custom_call.1} parent=1 // pred_check_branch
      %22 = sbr.rel (0) target = $region21
    $region20: #{tpu_custom_call.1} parent=1 // pred_region
      _
    $region21: #{tpu_custom_call.1} parent=1 // pred_fallthru
      _
    // Predicated region
    $region22: #{tpu_custom_call.1} parent=1 // pred_check
      _
    $region23: #{tpu_custom_call.1} parent=1 // pred_check_branch
      %24 = sbr.rel (0) target = $region25
    $region24: #{tpu_custom_call.1} parent=1 // pred_region
      _
    $region25: #{tpu_custom_call.1} parent=1 // pred_fallthru
      _
    // Predicated region
    $region26: #{tpu_custom_call.1} parent=1 // pred_check
      _
    $region27: #{tpu_custom_call.1} parent=1 // pred_check_branch
      %26 = sbr.rel (0) target = $region29
    $region28: #{tpu_custom_call.1} parent=1 // pred_region
      _
    $region29: #{tpu_custom_call.1} parent=1 // pred_fallthru
      _
    %v28 = vld [vmem:[%s0] sm:$0xff]
    %v29 = vpack.c.bf16 %v28, %v28
    %v30 = vld [vmem:[%s1] sm:$0xf]
    %v31 = vld [vmem:[%s1 + $0x4] sm:$0xf]
    %v32 = vld [vmem:[%s4] sm:$0x1]
    %v34 = vlaneseq
    %v35 = vshrl.u32 %v34, 7
    %v36 = vsub.s32 0, %v35
    %v37 = vrot.slane %v32, %v36
    %v41 = vunpack.c.l.b16 %v30
    %v42 = vunpack.c.l.b16 %v31
    %v43 = vpack.c.b16 %v42, %v41
    %vm45 = vcmask 130048
    %v47 = vsel %vm45, %v29, 0
    %49 = vmatprep.subr.bf16.mxu0 0
    %50 = vmatpush1.bf16.msra.mxu0 %v43
    %51 = vmatprep.subr.bf16.mxu0 0
    %52 = vmatpush1.bf16.msra.mxu0 0
    %53 = vmatprep.subr.bf16.mxu0 0
    %54 = vmatpush1.bf16.msra.mxu0 0
    %55 = vmatprep.subr.bf16.mxu0 0
    %56 = vmatpush1.bf16.msra.mxu0 0
    %57 = vmatprep.subr.bf16.mxu0 0
    %58 = vmatpush1.bf16.msra.mxu0 0
    %59 = vmatprep.subr.bf16.mxu0 0
    %60 = vmatpush1.bf16.msra.mxu0 0
    %61 = vmatprep.subr.bf16.mxu0 0
    %62 = vmatpush1.bf16.msra.mxu0 0
    %63 = vmatprep.subr.bf16.mxu0 0
    %64 = vmatpush1.bf16.msra.mxu0 0
    %65 = vmatprep.subr.bf16.mxu0 0
    %66 = vmatpush1.bf16.msra.mxu0 0
    %67 = vmatprep.subr.bf16.mxu0 0
    %68 = vmatpush1.bf16.msra.mxu0 0
    %69 = vmatprep.subr.bf16.mxu0 0
    %70 = vmatpush1.bf16.msra.mxu0 0
    %71 = vmatprep.subr.bf16.mxu0 0
    %72 = vmatpush1.bf16.msra.mxu0 0
    %73 = vmatprep.subr.bf16.mxu0 0
    %74 = vmatpush1.bf16.msra.mxu0 0
    %75 = vmatprep.subr.bf16.mxu0 0
    %76 = vmatpush1.bf16.msra.mxu0 0
    %77 = vmatprep.subr.bf16.mxu0 0
    %78 = vmatpush1.bf16.msra.mxu0 0
    %79 = vmatprep.subr.bf16.mxu0 0
    %80 = vmatpush1.bf16.msra.mxu0 0
    %81 = vmatprep.mubr.bf16.mxu0 0
    %82 = vmatmul.mubr.bf16.gmra.mrb[0].mxu0 %v47
    %v83 = vpop.f32.mrb[0].mxu0
    %v84 = vadd.f32 %v37, %v83
    %v85 = vpop.f32.mrb[0].mxu0
    %v86 = vpop.f32.mrb[0].mxu0
    %v87 = vpop.f32.mrb[0].mxu0
    %88 = vdwg.mxu0
    %v89 = vmax.f32 %v84, 0.0
    %v90 = vpack.c.bf16 %v89, %v89
    %v91 = vld [vmem:[%s2] sm:$0xf]
    %v92 = vld [vmem:[%s2 + $0x4] sm:$0xf]
    %v93 = vld [vmem:[%s2 + $0x8] sm:$0xf]
    %v94 = vld [vmem:[%s2 + $0xc] sm:$0xf]
    %v95 = vld [vmem:[%s2 + $0x10] sm:$0xf]
    %v96 = vld [vmem:[%s2 + $0x14] sm:$0xf]
    %v97 = vld [vmem:[%s2 + $0x18] sm:$0xf]
    %v98 = vld [vmem:[%s2 + $0x1c] sm:$0xf]
    %v99 = vld [vmem:[%s2 + $0x20] sm:$0xf]
    %v100 = vld [vmem:[%s2 + $0x24] sm:$0xf]
    %v101 = vld [vmem:[%s2 + $0x28] sm:$0xf]
    %v102 = vld [vmem:[%s2 + $0x2c] sm:$0xf]
    %v103 = vld [vmem:[%s2 + $0x30] sm:$0xf]
    %v104 = vld [vmem:[%s2 + $0x34] sm:$0xf]
    %v105 = vld [vmem:[%s2 + $0x38] sm:$0xf]
    %v106 = vld [vmem:[%s2 + $0x3c] sm:$0xf]
    %v107 = vld [vmem:[%s5] sm:$0x1]
    %v109 = vlaneseq
    %v110 = vshrl.u32 %v109, 7
    %v111 = vsub.s32 0, %v110
    %v112 = vrot.slane %v107, %v111
    %v130 = vunpack.c.l.b16 %v91
    %v131 = vunpack.c.l.b16 %v92
    %v132 = vunpack.c.l.b16 %v93
    %v133 = vunpack.c.l.b16 %v94
    %v134 = vunpack.c.l.b16 %v95
    %v135 = vunpack.c.l.b16 %v96
    %v136 = vunpack.c.l.b16 %v97
    %v137 = vunpack.c.l.b16 %v98
    %v138 = vunpack.c.l.b16 %v99
    %v139 = vunpack.c.l.b16 %v100
    %v140 = vunpack.c.l.b16 %v101
    %v141 = vunpack.c.l.b16 %v102
    %v142 = vunpack.c.l.b16 %v103
    %v143 = vunpack.c.l.b16 %v104
    %v144 = vunpack.c.l.b16 %v105
    %v145 = vunpack.c.l.b16 %v106
    %v146 = vpack.c.b16 %v131, %v130
    %v147 = vpack.c.b16 %v133, %v132
    %v148 = vpack.c.b16 %v135, %v134
    %v149 = vpack.c.b16 %v137, %v136
    %v150 = vpack.c.b16 %v139, %v138
    %v151 = vpack.c.b16 %v141, %v140
    %v152 = vpack.c.b16 %v143, %v142
    %v153 = vpack.c.b16 %v145, %v144
    %162 = vmatprep.subr.bf16.mxu0 0
    %163 = vmatpush1.bf16.msra.mxu0 %v146
    %164 = vmatprep.subr.bf16.mxu0 0
    %165 = vmatpush1.bf16.msra.mxu0 %v147
    %166 = vmatprep.subr.bf16.mxu0 0
    %167 = vmatpush1.bf16.msra.mxu0 %v148
    %168 = vmatprep.subr.bf16.mxu0 0
    %169 = vmatpush1.bf16.msra.mxu0 %v149
    %170 = vmatprep.subr.bf16.mxu0 0
    %171 = vmatpush1.bf16.msra.mxu0 %v150
    %172 = vmatprep.subr.bf16.mxu0 0
    %173 = vmatpush1.bf16.msra.mxu0 %v151
    %174 = vmatprep.subr.bf16.mxu0 0
    %175 = vmatpush1.bf16.msra.mxu0 %v152
    %176 = vmatprep.subr.bf16.mxu0 0
    %177 = vmatpush1.bf16.msra.mxu0 %v153
    %178 = vmatprep.subr.bf16.mxu0 0
    %179 = vmatpush1.bf16.msra.mxu0 0
    %180 = vmatprep.subr.bf16.mxu0 0
    %181 = vmatpush1.bf16.msra.mxu0 0
    %182 = vmatprep.subr.bf16.mxu0 0
    %183 = vmatpush1.bf16.msra.mxu0 0
    %184 = vmatprep.subr.bf16.mxu0 0
    %185 = vmatpush1.bf16.msra.mxu0 0
    %186 = vmatprep.subr.bf16.mxu0 0
    %187 = vmatpush1.bf16.msra.mxu0 0
    %188 = vmatprep.subr.bf16.mxu0 0
    %189 = vmatpush1.bf16.msra.mxu0 0
    %190 = vmatprep.subr.bf16.mxu0 0
    %191 = vmatpush1.bf16.msra.mxu0 0
    %192 = vmatprep.subr.bf16.mxu0 0
    %193 = vmatpush1.bf16.msra.mxu0 0
    %194 = vmatprep.mubr.bf16.mxu0 0
    %195 = vmatmul.mubr.bf16.gmra.mrb[0].mxu0 %v90
    %v196 = vpop.f32.mrb[0].mxu0
    %v197 = vadd.f32 %v112, %v196
    %v198 = vpop.f32.mrb[0].mxu0
    %v199 = vpop.f32.mrb[0].mxu0
    %v200 = vpop.f32.mrb[0].mxu0
    %201 = vdwg.mxu0
    %v202 = vmax.f32 %v197, 0.0
    %v203 = vpack.c.bf16 %v202, %v202
    %v204 = vld [vmem:[%s3] sm:$0xf]
    %v205 = vld [vmem:[%s3 + $0x4] sm:$0xf]
    %v206 = vld [vmem:[%s3 + $0x8] sm:$0xf]
    %v207 = vld [vmem:[%s3 + $0xc] sm:$0xf]
    %v208 = vld [vmem:[%s6] sm:$0x1]
    %v210 = vlaneseq
    %v211 = vshrl.u32 %v210, 7
    %v212 = vsub.s32 0, %v211
    %v213 = vrot.slane %v208, %v212
    %v219 = vunpack.c.l.b16 %v204
    %v220 = vunpack.c.l.b16 %v205
    %v221 = vunpack.c.l.b16 %v206
    %v222 = vunpack.c.l.b16 %v207
    %v223 = vpack.c.b16 %v220, %v219
    %v224 = vpack.c.b16 %v222, %v221
    %vm227 = vcmask 261120
    %v229 = vsel %vm227, %v203, 0
    %231 = vmatprep.subr.bf16.mxu0 0
    %232 = vmatpush1.bf16.msra.mxu0 %v223
    %233 = vmatprep.subr.bf16.mxu0 0
    %234 = vmatpush1.bf16.msra.mxu0 %v224
    %235 = vmatprep.subr.bf16.mxu0 0
    %236 = vmatpush1.bf16.msra.mxu0 0
    %237 = vmatprep.subr.bf16.mxu0 0
    %238 = vmatpush1.bf16.msra.mxu0 0
    %239 = vmatprep.subr.bf16.mxu0 0
    %240 = vmatpush1.bf16.msra.mxu0 0
    %241 = vmatprep.subr.bf16.mxu0 0
    %242 = vmatpush1.bf16.msra.mxu0 0
    %243 = vmatprep.subr.bf16.mxu0 0
    %244 = vmatpush1.bf16.msra.mxu0 0
    %245 = vmatprep.subr.bf16.mxu0 0
    %246 = vmatpush1.bf16.msra.mxu0 0
    %247 = vmatprep.subr.bf16.mxu0 0
    %248 = vmatpush1.bf16.msra.mxu0 0
    %249 = vmatprep.subr.bf16.mxu0 0
    %250 = vmatpush1.bf16.msra.mxu0 0
    %251 = vmatprep.subr.bf16.mxu0 0
    %252 = vmatpush1.bf16.msra.mxu0 0
    %253 = vmatprep.subr.bf16.mxu0 0
    %254 = vmatpush1.bf16.msra.mxu0 0
    %255 = vmatprep.subr.bf16.mxu0 0
    %256 = vmatpush1.bf16.msra.mxu0 0
    %257 = vmatprep.subr.bf16.mxu0 0
    %258 = vmatpush1.bf16.msra.mxu0 0
    %259 = vmatprep.subr.bf16.mxu0 0
    %260 = vmatpush1.bf16.msra.mxu0 0
    %261 = vmatprep.subr.bf16.mxu0 0
    %262 = vmatpush1.bf16.msra.mxu0 0
    %263 = vmatprep.mubr.bf16.mxu0 0
    %264 = vmatmul.mubr.bf16.gmra.mrb[0].mxu0 %v229
    %v265 = vpop.f32.mrb[0].mxu0
    %v266 = vadd.f32 %v213, %v265
    %v267 = vpop.f32.mrb[0].mxu0
    %v268 = vpop.f32.mrb[0].mxu0
    %v269 = vpop.f32.mrb[0].mxu0
    %270 = vdwg.mxu0
    %vm271 = vcmask 64512
    %272 = vst.msk [vmem:[#allocation2] sm:$0xff] %vm271, %v266
    // Predicated region
    $region30: #{tpu_custom_call.1} parent=1 // pred_check
      _
    $region31: #{tpu_custom_call.1} parent=1 // pred_check_branch
      %274 = sbr.rel (0) target = $region33
    $region32: #{tpu_custom_call.1} parent=1 // pred_region
      %s276 = ssub.s32 128, 128
      %277 = vsyncadd [#allocation3], %s276
      %s279 = sshll.u32 [#allocation2], 4
      %s280 = int_to_ptr.vmem [resolvable:$true] %s279
      %282 = dma.vmem_to_hbm [thread:$0]  %s280, 128, %s7, [#allocation3]
    $region33: #{tpu_custom_call.1} parent=1 // pred_fallthru
      _
    // Predicated region
    $region34: #{tpu_custom_call.1} parent=1 // pred_check
      _
    $region35: #{tpu_custom_call.1} parent=1 // pred_check_branch
      %284 = sbr.rel (0) target = $region37
    $region36: #{tpu_custom_call.1} parent=1 // pred_region
      %285 = dma.done [#allocation3], 128
    $region37: #{tpu_custom_call.1} parent=1 // pred_fallthru
      _
    %286 = vsyncpa [#allocation3], 1

</llo_original>
